<compile_context>
chip_gen: v7x
topology: tpu7x:2x2x1
jax: 0.10.0
libtpu: 0.0.40
codegen_flags: <defaults>
</compile_context>

<pallas_src>
import functools

import jax
import jax.numpy as jnp
from jax import lax
from jax.experimental import pallas as pl
from jax.experimental.pallas import tpu as pltpu

LANE = 128       # channel dims padded to a multiple of this (lane granule)
MAX_TM = 1024    # rows per activation tile for the 1x1 conv (multiple of 8)
MAX_L3 = 2048    # target output rows (padded-width domain) per 3x3 conv block
PADR = 8         # guard rows around the flattened 3x3 input window


def _round_up(x, m):
    return ((x + m - 1) // m) * m


# ------------------------- 1x1 conv (+ residual) kernel ---------------------- #

def _mm_bias_kernel(x_ref, w_ref, b_ref, o_ref):
    # x: (TM, Cin) bf16, w: (Cin, Cp) bf16 resident, b: (1, Cp) f32
    acc = jnp.dot(x_ref[...], w_ref[...], preferred_element_type=jnp.float32)
    o_ref[...] = (acc + b_ref[...]).astype(o_ref.dtype)


def _mm_bias_add_kernel(x_ref, w_ref, b_ref, r_ref, o_ref):
    # same as above + fused residual add (r: (TM, Cp) bf16)
    acc = jnp.dot(x_ref[...], w_ref[...], preferred_element_type=jnp.float32)
    acc = acc + b_ref[...] + r_ref[...].astype(jnp.float32)
    o_ref[...] = acc.astype(o_ref.dtype)


def conv1x1(x_nhwc, w, b, residual=None, out_dtype=jnp.bfloat16, tm=MAX_TM):
    """1x1 conv (+ optional residual add) as a tiled matmul+bias Pallas kernel.

    x: (N,H,W,Cin_pad), w: (Cin_pad, Cp), b: (Cp,), residual: (N,H,W,Cp) or None.
    """
    N, H, W, Cin = x_nhwc.shape
    Cp = w.shape[1]
    M = N * H * W
    tm = min(tm, _round_up(M, 8))
    Mp = _round_up(M, tm)

    x2d = x_nhwc.reshape(M, Cin).astype(jnp.bfloat16)
    if Mp != M:
        x2d = jnp.pad(x2d, ((0, Mp - M), (0, 0)))
    wb = w.astype(jnp.bfloat16)
    b2 = b.reshape(1, Cp).astype(jnp.float32)

    grid = (Mp // tm,)
    x_spec = pl.BlockSpec((tm, Cin), lambda i: (i, 0))   # pipelined activation tile
    w_spec = pl.BlockSpec((Cin, Cp), lambda i: (0, 0))   # VMEM-resident weights
    b_spec = pl.BlockSpec((1, Cp), lambda i: (0, 0))     # VMEM-resident bias
    o_spec = pl.BlockSpec((tm, Cp), lambda i: (i, 0))
    params = pltpu.CompilerParams(dimension_semantics=("parallel",))

    if residual is None:
        out = pl.pallas_call(
            _mm_bias_kernel,
            out_shape=jax.ShapeDtypeStruct((Mp, Cp), out_dtype),
            grid=grid, in_specs=[x_spec, w_spec, b_spec], out_specs=o_spec,
            compiler_params=params,
        )(x2d, wb, b2)
    else:
        r2d = residual.reshape(M, Cp).astype(jnp.bfloat16)
        if Mp != M:
            r2d = jnp.pad(r2d, ((0, Mp - M), (0, 0)))
        r_spec = pl.BlockSpec((tm, Cp), lambda i: (i, 0))
        out = pl.pallas_call(
            _mm_bias_add_kernel,
            out_shape=jax.ShapeDtypeStruct((Mp, Cp), out_dtype),
            grid=grid, in_specs=[x_spec, w_spec, b_spec, r_spec], out_specs=o_spec,
            compiler_params=params,
        )(x2d, wb, b2, r2d)

    out = out[:M] if Mp != M else out
    return out.reshape(N, H, W, Cp)


# --------------------------- fused 3x3 conv kernel --------------------------- #

def _conv3x3_kernel(x_ref, w_ref, b_ref, o_ref, *, L, Wp, Cin):
    # x_ref: (1, WLEN, Cin) bf16 -- row-flattened, width-padded rows + guard rows
    # w_ref: (9*Cin, Cp) bf16 resident; b_ref: (1, Cp) f32; o_ref: (1, L, Cp) f32
    acc = None
    for k in range(9):
        dy, dx = divmod(k, 3)
        start = PADR + dy * Wp + dx - 1          # static shift per tap
        xs = x_ref[0, start:start + L, :]
        wk = w_ref[k * Cin:(k + 1) * Cin, :]
        p = jnp.dot(xs, wk, preferred_element_type=jnp.float32)
        acc = p if acc is None else acc + p
    o_ref[0] = (acc + b_ref[...]).astype(o_ref.dtype)


def conv3x3(x_nhwc, w9, b):
    """3x3 conv, stride 1, padding 1. The im2col is fused into the kernel as 9
    row-shifted matmuls on a row-flattened, width-padded activation block.

    x: (N,H,W,Cin_pad), w9: (9, Cin_pad, Cp) taps in row-major (dy,dx), b: (Cp,).
    """
    N, H, W, Cin = x_nhwc.shape
    Cp = w9.shape[-1]
    Wp = W + 2

    TH = max(1, min(H, MAX_L3 // Wp))     # output image rows per grid step
    Hb = -(-H // TH)                      # ceil(H / TH)
    Hpad = Hb * TH
    L = TH * Wp                           # output rows per block (padded width)
    WLEN = (TH + 2) * Wp + 2 * PADR       # input rows per block (with guards)

    # spatial zero pad (1 all around, extra zero rows at the bottom up to Hpad)
    xp = jnp.pad(x_nhwc.astype(jnp.bfloat16),
                 ((0, 0), (1, 1 + (Hpad - H)), (1, 1), (0, 0)))
    # flatten rows and add guard rows so every shifted tap window is in bounds
    xf = xp.reshape(N, (Hpad + 2) * Wp, Cin)
    xf = jnp.pad(xf, ((0, 0), (PADR, PADR), (0, 0)))
    if Hb == 1:
        xg = xf.reshape(N, 1, WLEN, Cin)                      # no copy
    else:
        xg = jnp.stack([xf[:, i * L:i * L + WLEN, :] for i in range(Hb)], axis=1)
    xg = xg.reshape(N * Hb, WLEN, Cin)

    wcol = w9.reshape(9 * Cin, Cp).astype(jnp.bfloat16)
    b2 = b.reshape(1, Cp).astype(jnp.float32)

    kernel = functools.partial(_conv3x3_kernel, L=L, Wp=Wp, Cin=Cin)
    out = pl.pallas_call(
        kernel,
        out_shape=jax.ShapeDtypeStruct((N * Hb, L, Cp), jnp.float32),
        grid=(N * Hb,),
        in_specs=[
            pl.BlockSpec((1, WLEN, Cin), lambda i: (i, 0, 0)),   # pipelined block
            pl.BlockSpec((9 * Cin, Cp), lambda i: (0, 0)),       # resident weights
            pl.BlockSpec((1, Cp), lambda i: (0, 0)),             # resident bias
        ],
        out_specs=pl.BlockSpec((1, L, Cp), lambda i: (i, 0, 0)),
        compiler_params=pltpu.CompilerParams(dimension_semantics=("parallel",)),
    )(xg, wcol, b2)

    # (N*Hb, TH*Wp, Cp) -> (N, Hpad, Wp, Cp); drop pad rows / pad columns
    out = out.reshape(N, Hpad, Wp, Cp)[:, :H, 1:W + 1, :]
    return out


# ------------------------------ upsample (glue) ------------------------------ #

def upsample_nearest(x_nhwc, out_h, out_w):
    """F.interpolate(mode='nearest'). Integer ratios are a pure layout op."""
    N, H, W, C = x_nhwc.shape
    if out_h % H == 0 and out_w % W == 0:
        rh, rw = out_h // H, out_w // W
        y = jnp.broadcast_to(x_nhwc[:, :, None, :, None, :],
                             (N, H, rh, W, rw, C))
        return y.reshape(N, out_h, out_w, C)
    idx_h = (jnp.arange(out_h) * H) // out_h
    idx_w = (jnp.arange(out_w) * W) // out_w
    return jnp.take(jnp.take(x_nhwc, idx_h, axis=1), idx_w, axis=2)


# --------------------------------- FPN --------------------------------------- #

def init_fpn_params(key, in_channels, out_channels):
    """Unpadded params, matching the PyTorch module's parameter shapes."""
    lat_w, lat_b, out_w, out_b = [], [], [], []
    keys = jax.random.split(key, 4 * len(in_channels))
    for i, cin in enumerate(in_channels):
        k0, k1, k2, k3 = keys[4 * i:4 * i + 4]
        lat_w.append(0.1 * jax.random.normal(k0, (cin, out_channels), jnp.float32))
        lat_b.append(0.1 * jax.random.normal(k1, (out_channels,), jnp.float32))
        out_w.append(0.1 * jax.random.normal(k2, (9, out_channels, out_channels), jnp.float32))
        out_b.append(0.1 * jax.random.normal(k3, (out_channels,), jnp.float32))
    return lat_w, lat_b, out_w, out_b


def fpn_forward(features_nchw, params):
    """Matches FPN.forward: top-down pathway with nearest upsampling."""
    lat_w, lat_b, out_w, out_b = params
    out_channels = lat_b[0].shape[0]
    Cp = _round_up(out_channels, LANE)
    n = len(features_nchw)

    feats, lw, lb, ow, ob = [], [], [], [], []
    for i in range(n):
        f = jnp.transpose(features_nchw[i], (0, 2, 3, 1))          # NCHW -> NHWC
        cin = f.shape[-1]
        cinp = _round_up(cin, LANE)
        feats.append(jnp.pad(f, ((0, 0), (0, 0), (0, 0), (0, cinp - cin))))
        lw.append(jnp.pad(lat_w[i], ((0, cinp - cin), (0, Cp - out_channels))))
        lb.append(jnp.pad(lat_b[i], ((0, Cp - out_channels),)))
        ow.append(jnp.pad(out_w[i], ((0, 0),
                                     (0, Cp - out_channels),
                                     (0, Cp - out_channels))))
        ob.append(jnp.pad(out_b[i], ((0, Cp - out_channels),)))

    fpn = [None] * n
    top = conv1x1(feats[-1], lw[-1], lb[-1])                       # bf16 lateral
    fpn[-1] = conv3x3(top, ow[-1], ob[-1])                         # f32 output
    for i in range(n - 2, -1, -1):
        up = upsample_nearest(fpn[i + 1].astype(jnp.bfloat16),
                              feats[i].shape[1], feats[i].shape[2])
        mixed = conv1x1(feats[i], lw[i], lb[i], residual=up)       # lateral + up (fused)
        fpn[i] = conv3x3(mixed, ow[i], ob[i])

    # drop channel padding (padded lanes are exactly zero), NHWC -> NCHW
    return [jnp.transpose(f[..., :out_channels], (0, 3, 1, 2)) for f in fpn]


# --------------------------- pure-JAX reference ------------------------------ #

def _ref_conv1x1(x_nhwc, w, b):
    return jnp.einsum('nhwc,cd->nhwd', x_nhwc, w) + b


def _ref_conv3x3(x_nhwc, w9, b):
    hwio = w9.reshape(3, 3, w9.shape[1], w9.shape[2])
    y = lax.conv_general_dilated(
        x_nhwc, hwio, window_strides=(1, 1), padding=((1, 1), (1, 1)),
        dimension_numbers=('NHWC', 'HWIO', 'NHWC'))
    return y + b


def _ref_upsample_nearest(x_nhwc, out_h, out_w):
    N, H, W, C = x_nhwc.shape
    idx_h = (jnp.arange(out_h) * H) // out_h
    idx_w = (jnp.arange(out_w) * W) // out_w
    return x_nhwc[:, idx_h][:, :, idx_w]


def fpn_forward_ref(features_nchw, params):
    lat_w, lat_b, out_w, out_b = params
    feats = [jnp.transpose(f, (0, 2, 3, 1)) for f in features_nchw]
    n = len(feats)
    fpn = [None] * n
    fpn[-1] = _ref_conv3x3(_ref_conv1x1(feats[-1], lat_w[-1], lat_b[-1]),
                           out_w[-1], out_b[-1])
    for i in range(n - 2, -1, -1):
        lateral = _ref_conv1x1(feats[i], lat_w[i], lat_b[i])
        up = _ref_upsample_nearest(fpn[i + 1], lateral.shape[1], lateral.shape[2])
        fpn[i] = _ref_conv3x3(lateral + up, out_w[i], out_b[i])
    return [jnp.transpose(f, (0, 3, 1, 2)) for f in fpn]


# ---------------------------------- main ------------------------------------- #

if __name__ == "__main__":
    key = jax.random.PRNGKey(0)
    k_feat, k_param = jax.random.split(key)

    in_channels = [4, 8, 16]
    out_channels = 8
    spatials = [16, 8, 4]
    batch = 2

    fkeys = jax.random.split(k_feat, len(in_channels))
    features = [
        jax.random.normal(fkeys[i], (batch, c, s, s), jnp.float32)
        for i, (c, s) in enumerate(zip(in_channels, spatials))
    ]

    params = init_fpn_params(k_param, in_channels, out_channels)

    outs = fpn_forward(features, params)
    outs = [jax.block_until_ready(o) for o in outs]

    # sanity-check against a pure-JAX f32 reference (Pallas path uses bf16 MXU
    # inputs with f32 accumulation -> loose-ish tolerance)
    refs = fpn_forward_ref(features, params)
    for o, r in zip(outs, refs):
        assert o.shape == r.shape
        assert jnp.allclose(o, r, atol=3e-2, rtol=3e-2), "mismatch vs reference"

    print("KERNEL_OK")
</pallas_src>

<mosaic_0001>
module attributes {stable_mosaic.version = 11 : i64} {
  func.func @_mm_bias_kernel(%arg0: i32, %arg1: memref<32x128xbf16, #tpu.memory_space<vmem>>, %arg2: memref<128x128xbf16, #tpu.memory_space<vmem>>, %arg3: memref<1x128xf32, #tpu.memory_space<vmem>>, %arg4: memref<32x128xbf16, #tpu.memory_space<vmem>>) attributes {dimension_semantics = [#tpu.dimension_semantics<parallel>], iteration_bounds = array<i64: 1>, scalar_prefetch = 0 : i64, scratch_operands = 0 : i64, tpu.core_type = #tpu.core_type<tc>, window_params = [{transform_indices = @transform_0, window_bounds = array<i64: 32, 128>}, {pipeline_mode = #tpu.pipeline_mode<synchronous>, transform_indices = @transform_1, window_bounds = array<i64: 128, 128>}, {pipeline_mode = #tpu.pipeline_mode<synchronous>, transform_indices = @transform_2, window_bounds = array<i64: 1, 128>}, {transform_indices = @transform_3, window_bounds = array<i64: 32, 128>}]} {
    %c0 = arith.constant 0 : index
    %c0_0 = arith.constant 0 : index
    %0 = vector.load %arg1[%c0, %c0_0] : memref<32x128xbf16, #tpu.memory_space<vmem>>, vector<32x128xbf16>
    %c0_1 = arith.constant 0 : index
    %c0_2 = arith.constant 0 : index
    %1 = vector.load %arg2[%c0_1, %c0_2] : memref<128x128xbf16, #tpu.memory_space<vmem>>, vector<128x128xbf16>
    %cst = arith.constant dense<0.000000e+00> : vector<32x128xf32>
    %2 = tpu.matmul %0, %1, %cst {dimension_numbers = #tpu.dot_dimension_numbers<[1], [0], [0], [1], [0, 0, 1, 1], [], []>} : vector<32x128xbf16>, vector<128x128xbf16>, vector<32x128xf32> -> vector<32x128xf32>
    %c0_3 = arith.constant 0 : index
    %c0_4 = arith.constant 0 : index
    %3 = vector.load %arg3[%c0_3, %c0_4] : memref<1x128xf32, #tpu.memory_space<vmem>>, vector<1x128xf32>
    %4 = vector.broadcast %3 : vector<1x128xf32> to vector<32x128xf32>
    %5 = arith.addf %2, %4 : vector<32x128xf32>
    %6 = arith.truncf %5 : vector<32x128xf32> to vector<32x128xbf16>
    %c0_5 = arith.constant 0 : index
    %c0_6 = arith.constant 0 : index
    %7 = vector.load %arg4[%c0_5, %c0_6] : memref<32x128xbf16, #tpu.memory_space<vmem>>, vector<32x128xbf16>
    tpu.vector_store %arg4[%c0_5, %c0_6], %6 {strides = array<i32>} : memref<32x128xbf16, #tpu.memory_space<vmem>>, vector<32x128xbf16>,
    return
  }
  func.func @transform_0(%arg0: i32) -> (i32, i32) {
    %c0_i32 = arith.constant 0 : i32
    %c0_i32_0 = arith.constant 0 : i32
    return %arg0, %c0_i32 : i32, i32
  }
  func.func @transform_1(%arg0: i32) -> (i32, i32) {
    %c0_i32 = arith.constant 0 : i32
    %c0_i32_0 = arith.constant 0 : i32
    %c0_i32_1 = arith.constant 0 : i32
    return %c0_i32, %c0_i32_0 : i32, i32
  }
  func.func @transform_2(%arg0: i32) -> (i32, i32) {
    %c0_i32 = arith.constant 0 : i32
    %c0_i32_0 = arith.constant 0 : i32
    %c0_i32_1 = arith.constant 0 : i32
    return %c0_i32, %c0_i32_0 : i32, i32
  }
  func.func @transform_3(%arg0: i32) -> (i32, i32) {
    %c0_i32 = arith.constant 0 : i32
    %c0_i32_0 = arith.constant 0 : i32
    return %arg0, %c0_i32 : i32, i32
  }
}

</mosaic_0001>

<llo_original>
// kernel: tpu_custom_call.1
$region0: #{tpu_custom_call.1}
  #allocation0 [shape = 'u32[]', space=smem, size = 0x4, offset = 0x4, fixed_abs, tag = 'smem constant byte address 0x4 - core index']
  #allocation1 [shape = 'u32[144,128]{1,0:T(1,128)}', space=vmem, size = 0x12000, scoped, tag = 'internal scratch']
  %s0 = inlined_call_operand.hbm [shape: bf16[32,128], index: 0, kind: input, shape index: {}]
  %s1 = inlined_call_operand.hbm [shape: bf16[128,128], index: 1, kind: input, shape index: {}]
  %s2 = inlined_call_operand.vmem [shape: f32[1,128], index: 2, kind: input, shape index: {}]
  %s3 = inlined_call_operand.hbm [shape: bf16[32,128], index: 3, kind: output, shape index: {}]
  %s4 = sld [smem:[#allocation0]]
  $region30: #{tpu_custom_call.1} parent=0
    _
  %s6 = ssub.s32 1, %s4
  %s7 = scalar_select 0, %s6, %s4
  $region1: #{tpu_custom_call.1} parent=0
    #allocation2 [shape = 'u8[8192]{0}', space=vmem, size = 0x2000, scoped, tag = 'input window, operand 0, single buffered']
    #allocation3 [shape = 's32[1]{0}', space=sflag, size = 0x4, scoped, tag = 'scoped memory for tpu_custom_call.1']
    #allocation4 [shape = 's32[1]{0}', space=sflag, size = 0x4, scoped, tag = 'scoped memory for tpu_custom_call.1']
    #allocation5 [shape = 'u8[32768]{0}', space=vmem, size = 0x8000, scoped, tag = 'input window, operand 1, single buffered']
    #allocation6 [shape = 's32[1]{0}', space=sflag, size = 0x4, scoped, tag = 'scoped memory for tpu_custom_call.1']
    #allocation7 [shape = 'u8[8192]{0}', space=vmem, size = 0x2000, scoped, tag = 'output window, operand 0, single buffered']
    %8 = vsyncpa [#allocation3], 0
    %9 = vsyncpa [#allocation6], 0
    %10 = vsyncpa [#allocation4], 0
    // Predicated region
    $region2: #{tpu_custom_call.1} parent=1 // pred_check
      _
    $region3: #{tpu_custom_call.1} parent=1 // pred_check_branch
      %12 = sbr.rel (0) target = $region5
    $region4: #{tpu_custom_call.1} parent=1 // pred_region
      %s14 = ssub.s32 256, 256
      %15 = vsyncadd [#allocation3], %s14
      %s16 = sshll.u32 [#allocation2], 4
      %s17 = int_to_ptr.vmem [resolvable:$true] %s16
      %22 = dma.hbm_to_vmem [thread:$0]  %s0, 256, %s17, [#allocation3], 64, 64, 4
    $region5: #{tpu_custom_call.1} parent=1 // pred_fallthru
      _
    // Predicated region
    $region6: #{tpu_custom_call.1} parent=1 // pred_check
      _
    $region7: #{tpu_custom_call.1} parent=1 // pred_check_branch
      %24 = sbr.rel (0) target = $region9
    $region8: #{tpu_custom_call.1} parent=1 // pred_region
      %s26 = ssub.s32 1024, 1024
      %27 = vsyncadd [#allocation6], %s26
      %s28 = sshll.u32 [#allocation5], 4
      %s29 = int_to_ptr.vmem [resolvable:$true] %s28
      %34 = dma.hbm_to_vmem [thread:$0]  %s1, 1024, %s29, [#allocation6], 64, 64, 4
    $region9: #{tpu_custom_call.1} parent=1 // pred_fallthru
      _
    // Predicated region
    $region10: #{tpu_custom_call.1} parent=1 // pred_check
      _
    $region11: #{tpu_custom_call.1} parent=1 // pred_check_branch
      %36 = sbr.rel (0) target = $region13
    $region12: #{tpu_custom_call.1} parent=1 // pred_region
      _
    $region13: #{tpu_custom_call.1} parent=1 // pred_fallthru
      _
    // Predicated region
    $region14: #{tpu_custom_call.1} parent=1 // pred_check
      _
    $region15: #{tpu_custom_call.1} parent=1 // pred_check_branch
      %38 = sbr.rel (0) target = $region17
    $region16: #{tpu_custom_call.1} parent=1 // pred_region
      %39 = dma.done [#allocation3], 256
    $region17: #{tpu_custom_call.1} parent=1 // pred_fallthru
      _
    // Predicated region
    $region18: #{tpu_custom_call.1} parent=1 // pred_check
      _
    $region19: #{tpu_custom_call.1} parent=1 // pred_check_branch
      %41 = sbr.rel (0) target = $region21
    $region20: #{tpu_custom_call.1} parent=1 // pred_region
      %42 = dma.done [#allocation6], 1024
    $region21: #{tpu_custom_call.1} parent=1 // pred_fallthru
      _
    %v44 = vld [vmem:[#allocation2] sm:$0xf]
    %v45 = vld [vmem:[#allocation2 + $0x4] sm:$0xf]
    %v46 = vld [vmem:[#allocation2 + $0x8] sm:$0xf]
    %v47 = vld [vmem:[#allocation2 + $0xc] sm:$0xf]
    %v48 = vld [vmem:[#allocation5] sm:$0xf]
    %v49 = vld [vmem:[#allocation5 + $0x4] sm:$0xf]
    %v50 = vld [vmem:[#allocation5 + $0x8] sm:$0xf]
    %v51 = vld [vmem:[#allocation5 + $0xc] sm:$0xf]
    %v52 = vld [vmem:[#allocation5 + $0x10] sm:$0xf]
    %v53 = vld [vmem:[#allocation5 + $0x14] sm:$0xf]
    %v54 = vld [vmem:[#allocation5 + $0x18] sm:$0xf]
    %v55 = vld [vmem:[#allocation5 + $0x1c] sm:$0xf]
    %v56 = vld [vmem:[#allocation5 + $0x20] sm:$0xf]
    %v57 = vld [vmem:[#allocation5 + $0x24] sm:$0xf]
    %v58 = vld [vmem:[#allocation5 + $0x28] sm:$0xf]
    %v59 = vld [vmem:[#allocation5 + $0x2c] sm:$0xf]
    %v60 = vld [vmem:[#allocation5 + $0x30] sm:$0xf]
    %v61 = vld [vmem:[#allocation5 + $0x34] sm:$0xf]
    %v62 = vld [vmem:[#allocation5 + $0x38] sm:$0xf]
    %v63 = vld [vmem:[#allocation5 + $0x3c] sm:$0xf]
    %v64 = vld [vmem:[%s2] sm:$0x1]
    %v66 = vlaneseq
    %v67 = vshrl.u32 %v66, 7
    %v68 = vsub.s32 0, %v67
    %v69 = vrot.slane %v64, %v68
    %v75 = vunpack.c.l.b16 %v44
    %v76 = vunpack.c.l.b16 %v45
    %v77 = vunpack.c.l.b16 %v46
    %v78 = vunpack.c.l.b16 %v47
    %v79 = vpack.c.b16 %v76, %v75
    %v80 = vpack.c.b16 %v78, %v77
    %v99 = vunpack.c.l.b16 %v48
    %v100 = vunpack.c.l.b16 %v49
    %v101 = vunpack.c.l.b16 %v50
    %v102 = vunpack.c.l.b16 %v51
    %v103 = vunpack.c.l.b16 %v52
    %v104 = vunpack.c.l.b16 %v53
    %v105 = vunpack.c.l.b16 %v54
    %v106 = vunpack.c.l.b16 %v55
    %v107 = vunpack.c.l.b16 %v56
    %v108 = vunpack.c.l.b16 %v57
    %v109 = vunpack.c.l.b16 %v58
    %v110 = vunpack.c.l.b16 %v59
    %v111 = vunpack.c.l.b16 %v60
    %v112 = vunpack.c.l.b16 %v61
    %v113 = vunpack.c.l.b16 %v62
    %v114 = vunpack.c.l.b16 %v63
    %v115 = vpack.c.b16 %v100, %v99
    %v116 = vpack.c.b16 %v102, %v101
    %v117 = vpack.c.b16 %v104, %v103
    %v118 = vpack.c.b16 %v106, %v105
    %v119 = vpack.c.b16 %v108, %v107
    %v120 = vpack.c.b16 %v110, %v109
    %v121 = vpack.c.b16 %v112, %v111
    %v122 = vpack.c.b16 %v114, %v113
    %131 = vmatprep.subr.bf16.mxu0 0
    %132 = vmatpush1.bf16.msra.mxu0 %v115
    %133 = vmatprep.subr.bf16.mxu0 0
    %134 = vmatpush1.bf16.msra.mxu0 %v116
    %135 = vmatprep.subr.bf16.mxu0 0
    %136 = vmatpush1.bf16.msra.mxu0 %v117
    %137 = vmatprep.subr.bf16.mxu0 0
    %138 = vmatpush1.bf16.msra.mxu0 %v118
    %139 = vmatprep.subr.bf16.mxu0 0
    %140 = vmatpush1.bf16.msra.mxu0 %v119
    %141 = vmatprep.subr.bf16.mxu0 0
    %142 = vmatpush1.bf16.msra.mxu0 %v120
    %143 = vmatprep.subr.bf16.mxu0 0
    %144 = vmatpush1.bf16.msra.mxu0 %v121
    %145 = vmatprep.subr.bf16.mxu0 0
    %146 = vmatpush1.bf16.msra.mxu0 %v122
    %147 = vmatprep.subr.bf16.mxu0 0
    %148 = vmatpush1.bf16.msra.mxu0 0
    %149 = vmatprep.subr.bf16.mxu0 0
    %150 = vmatpush1.bf16.msra.mxu0 0
    %151 = vmatprep.subr.bf16.mxu0 0
    %152 = vmatpush1.bf16.msra.mxu0 0
    %153 = vmatprep.subr.bf16.mxu0 0
    %154 = vmatpush1.bf16.msra.mxu0 0
    %155 = vmatprep.subr.bf16.mxu0 0
    %156 = vmatpush1.bf16.msra.mxu0 0
    %157 = vmatprep.subr.bf16.mxu0 0
    %158 = vmatpush1.bf16.msra.mxu0 0
    %159 = vmatprep.subr.bf16.mxu0 0
    %160 = vmatpush1.bf16.msra.mxu0 0
    %161 = vmatprep.subr.bf16.mxu0 0
    %162 = vmatpush1.bf16.msra.mxu0 0
    %163 = vmatprep.mubr.bf16.mxu0 0
    %164 = vmatmul.mubr.bf16.gmra.mrb[0].mxu0 %v79
    %v165 = vpop.f32.mrb[0].mxu0
    %v166 = vadd.f32 %v69, %v165
    %v167 = vpop.f32.mrb[0].mxu0
    %v168 = vpop.f32.mrb[0].mxu0
    %v169 = vadd.f32 %v69, %v168
    %v170 = vpop.f32.mrb[0].mxu0
    %171 = vmatprep.mubr.bf16.mxu0 0
    %172 = vmatmul.mubr.bf16.gmra.mrb[0].mxu0 %v80
    %v173 = vpop.f32.mrb[0].mxu0
    %v174 = vadd.f32 %v69, %v173
    %v175 = vpop.f32.mrb[0].mxu0
    %v176 = vpop.f32.mrb[0].mxu0
    %v177 = vadd.f32 %v69, %v176
    %v178 = vpop.f32.mrb[0].mxu0
    %179 = vdwg.mxu0
    %v180 = vpack.c.bf16 %v169, %v166
    %v181 = vpack.c.bf16 %v177, %v174
    %v184 = vunpack.c.l.b16 %v180
    %v185 = vunpack.c.h.b16 %v180
    %v186 = vunpack.c.l.b16 %v181
    %v187 = vunpack.c.h.b16 %v181
    %v188 = vpack.c.b16 %v184, %v184
    %v189 = vpack.c.b16 %v185, %v185
    %v190 = vpack.c.b16 %v186, %v186
    %v191 = vpack.c.b16 %v187, %v187
    %196 = vst [vmem:[#allocation7] sm:$0xf] %v188
    %197 = vst [vmem:[#allocation7 + $0x4] sm:$0xf] %v189
    %198 = vst [vmem:[#allocation7 + $0x8] sm:$0xf] %v190
    %199 = vst [vmem:[#allocation7 + $0xc] sm:$0xf] %v191
    // Predicated region
    $region22: #{tpu_custom_call.1} parent=1 // pred_check
      _
    $region23: #{tpu_custom_call.1} parent=1 // pred_check_branch
      %201 = sbr.rel (0) target = $region25
    $region24: #{tpu_custom_call.1} parent=1 // pred_region
      %s203 = ssub.s32 256, 256
      %204 = vsyncadd [#allocation4], %s203
      %s205 = sshll.u32 [#allocation7], 4
      %s206 = int_to_ptr.vmem [resolvable:$true] %s205
      %211 = dma.vmem_to_hbm [thread:$0]  %s206, 256, %s3, [#allocation4], 64, 64, 4
    $region25: #{tpu_custom_call.1} parent=1 // pred_fallthru
      _
    // Predicated region
    $region26: #{tpu_custom_call.1} parent=1 // pred_check
      _
    $region27: #{tpu_custom_call.1} parent=1 // pred_check_branch
      %213 = sbr.rel (0) target = $region29
    $region28: #{tpu_custom_call.1} parent=1 // pred_region
      %214 = dma.done [#allocation4], 256
    $region29: #{tpu_custom_call.1} parent=1 // pred_fallthru
      _
    %215 = vsyncpa [#allocation3], 1
    %216 = vsyncpa [#allocation6], 1
    %217 = vsyncpa [#allocation4], 1

</llo_original>
